<compile_context>
chip_gen: v7x
topology: tpu7x:2x2x1
jax: 0.10.0
libtpu: 0.0.40
codegen_flags: <defaults>
</compile_context>

<pallas_src>
import functools

import jax
import jax.numpy as jnp
from jax.experimental import pallas as pl
from jax.experimental.pallas import tpu as pltpu


# ------------------------------------------------------------------ kernel

def _embed_kernel(x_ref, s_ref, t_ref, w_ref, o_ref, *, C, BN):
    # x_ref: (BN, C, Lp)  batch block, joints*time flattened onto lanes, zero-padded to Lp
    # s_ref: (C, Lp)      BN scale  gamma / sqrt(var + eps), broadcast along T (zero-padded)
    # t_ref: (C, Lp)      BN shift  beta - mean * scale, broadcast along T (zero-padded)
    # w_ref: (C, D, 1)    raw 1x1 conv weight, one lane-0 column per input channel
    # o_ref: (BN, D, Lp)
    s = s_ref[...]                                   # (C, Lp)
    t = t_ref[...]                                   # (C, Lp)
    for n in range(BN):                              # BN is small: fully unrolled
        xh = x_ref[n] * s + t                        # eval-mode BatchNorm, (C, Lp)
        acc = xh[0:1, :] * w_ref[0]                  # (1,Lp)*(D,1) -> (D,Lp) VPU FMAs
        for c in range(1, C):                        # C is tiny (2-3)
            acc = acc + xh[c:c + 1, :] * w_ref[c]
        o_ref[n] = jnp.maximum(acc, 0.0)             # ReLU, lane-dense unmasked stores


# ------------------------------------------------------------------ wrapper

@jax.jit
def embed_forward(x, params):
    """embed(dim=C, dim1=D, norm=True, bias=False): norm_data -> cnn1x1 -> ReLU."""
    eps = 1e-5
    N, C, V, T = x.shape
    W = params["W"]                                   # (D, C) 1x1 conv weight (bias=False)
    D = W.shape[0]

    L = V * T
    Lp = ((L + 127) // 128) * 128                     # lane-dense output width (k * 128)

    # Eval-mode BatchNorm1d(C*V): per-(channel, joint) scale/shift, broadcast along T only.
    s = params["bn_g"] / jnp.sqrt(params["bn_v"] + eps)            # (C*V,)
    t = params["bn_b"] - params["bn_m"] * s                        # (C*V,)
    s_l = jnp.broadcast_to(s.reshape(C, V, 1), (C, V, T)).reshape(C, L)
    t_l = jnp.broadcast_to(t.reshape(C, V, 1), (C, V, T)).reshape(C, L)

    xr = x.reshape(N, C, L)
    if Lp != L:
        s_l = jnp.pad(s_l, ((0, 0), (0, Lp - L)))
        t_l = jnp.pad(t_l, ((0, 0), (0, Lp - L)))
        xr = jnp.pad(xr, ((0, 0), (0, 0), (0, Lp - L)))

    Wc = W.T[:, :, None]                              # (C, D, 1): lane-0 column per channel
    # (conv bias would be added inside the kernel's acc init; embed's default is bias=False)

    # Batch block: as many elements per step as fit a conservative VMEM budget
    # (safe for v5e's 16 MiB scoped default; in/out blocks are double-buffered).
    vmem_budget = 8 * 1024 * 1024
    per_elem = 2 * (C + D) * Lp * 4                   # double-buffered x + out bytes / element
    fixed = 2 * (2 * C * Lp + C * D) * 4              # resident scale/shift/weight
    BN = max(1, min(N, (vmem_budget - fixed) // max(per_elem, 1)))
    Np = ((N + BN - 1) // BN) * BN
    if Np != N:
        xr = jnp.pad(xr, ((0, Np - N), (0, 0), (0, 0)))

    out = pl.pallas_call(
        functools.partial(_embed_kernel, C=C, BN=BN),
        out_shape=jax.ShapeDtypeStruct((Np, D, Lp), jnp.float32),
        grid=(Np // BN,),
        in_specs=[
            pl.BlockSpec((BN, C, Lp), lambda i: (i, 0, 0)),
            pl.BlockSpec((C, Lp), lambda i: (0, 0)),
            pl.BlockSpec((C, Lp), lambda i: (0, 0)),
            pl.BlockSpec((C, D, 1), lambda i: (0, 0, 0)),
        ],
        out_specs=pl.BlockSpec((BN, D, Lp), lambda i: (i, 0, 0)),
        compiler_params=pltpu.CompilerParams(
            dimension_semantics=("parallel",)),
    )(xr, s_l, t_l, Wc)

    return out[:N, :, :L].reshape(N, D, V, T)         # PyTorch layout (N, dim1, V, T)


# ------------------------------------------------------------------ pure-JAX reference

def embed_reference(x, params):
    eps = 1e-5
    N, C, V, T = x.shape
    s = params["bn_g"] / jnp.sqrt(params["bn_v"] + eps)
    xf = x.reshape(N, C * V, T)
    xn = (xf - params["bn_m"][None, :, None]) * s[None, :, None] + params["bn_b"][None, :, None]
    xn = xn.reshape(N, C, V, T)
    y = jnp.einsum("ncvt,oc->novt", xn, params["W"])
    return jnp.maximum(y, 0.0)


# ------------------------------------------------------------------ main

if __name__ == "__main__":
    key = jax.random.PRNGKey(0)
    kx, kw, kg, kb, km, kv = jax.random.split(key, 6)

    N, C, V, T = 2, 3, 14, 16      # norm_data hard-codes 14 joints (BatchNorm1d(dim * 14))
    D = 64                         # dim1

    x = jax.random.normal(kx, (N, C, V, T), dtype=jnp.float32)
    params = dict(
        W=jax.random.normal(kw, (D, C), dtype=jnp.float32) * (C ** -0.5),
        bn_g=jax.random.uniform(kg, (C * V,), jnp.float32, 0.8, 1.2),
        bn_b=jax.random.normal(kb, (C * V,), dtype=jnp.float32) * 0.05,
        bn_m=jax.random.normal(km, (C * V,), dtype=jnp.float32) * 0.05,
        bn_v=jax.random.uniform(kv, (C * V,), jnp.float32, 0.8, 1.2),
    )

    out = embed_forward(x, params)
    out = jax.block_until_ready(out)

    ref = embed_reference(x, params)
    assert out.shape == (N, D, V, T) and out.dtype == jnp.float32
    assert jnp.allclose(out, ref, rtol=1e-4, atol=1e-4), float(jnp.max(jnp.abs(out - ref)))
    print("KERNEL_OK")
</pallas_src>

<mosaic_0001>
module attributes {stable_mosaic.version = 11 : i64} {
  func.func @_embed_kernel(%arg0: i32, %arg1: memref<2x3x256xf32, #tpu.memory_space<vmem>>, %arg2: memref<3x256xf32, #tpu.memory_space<vmem>>, %arg3: memref<3x256xf32, #tpu.memory_space<vmem>>, %arg4: memref<3x64x1xf32, #tpu.memory_space<vmem>>, %arg5: memref<2x64x256xf32, #tpu.memory_space<vmem>>) attributes {dimension_semantics = [#tpu.dimension_semantics<parallel>], iteration_bounds = array<i64: 1>, scalar_prefetch = 0 : i64, scratch_operands = 0 : i64, tpu.core_type = #tpu.core_type<tc>, window_params = [{transform_indices = @transform_0, window_bounds = array<i64: 2, 3, 256>}, {pipeline_mode = #tpu.pipeline_mode<synchronous>, transform_indices = @transform_1, window_bounds = array<i64: 3, 256>}, {pipeline_mode = #tpu.pipeline_mode<synchronous>, transform_indices = @transform_2, window_bounds = array<i64: 3, 256>}, {pipeline_mode = #tpu.pipeline_mode<synchronous>, transform_indices = @transform_3, window_bounds = array<i64: 3, 64, 1>}, {transform_indices = @transform_4, window_bounds = array<i64: 2, 64, 256>}]} {
    %c0 = arith.constant 0 : index
    %c0_0 = arith.constant 0 : index
    %0 = vector.load %arg2[%c0, %c0_0] : memref<3x256xf32, #tpu.memory_space<vmem>>, vector<3x256xf32>
    %c0_1 = arith.constant 0 : index
    %c0_2 = arith.constant 0 : index
    %1 = vector.load %arg3[%c0_1, %c0_2] : memref<3x256xf32, #tpu.memory_space<vmem>>, vector<3x256xf32>
    %c0_3 = arith.constant 0 : index
    %c0_4 = arith.constant 0 : index
    %c0_5 = arith.constant 0 : index
    %2 = vector.load %arg1[%c0_3, %c0_4, %c0_5] : memref<2x3x256xf32, #tpu.memory_space<vmem>>, vector<1x3x256xf32>
    %3 = vector.shape_cast %2 : vector<1x3x256xf32> to vector<3x256xf32>
    %4 = arith.mulf %3, %0 : vector<3x256xf32>
    %5 = arith.addf %4, %1 : vector<3x256xf32>
    %6 = vector.extract_strided_slice %5 {offsets = [0, 0], sizes = [1, 256], strides = [1, 1]} : vector<3x256xf32> to vector<1x256xf32>
    %c0_6 = arith.constant 0 : index
    %c0_7 = arith.constant 0 : index
    %c0_8 = arith.constant 0 : index
    %7 = vector.load %arg4[%c0_6, %c0_7, %c0_8] : memref<3x64x1xf32, #tpu.memory_space<vmem>>, vector<1x64x1xf32>
    %8 = vector.shape_cast %7 : vector<1x64x1xf32> to vector<64x1xf32>
    %9 = vector.broadcast %6 : vector<1x256xf32> to vector<64x256xf32>
    %10 = vector.broadcast %8 : vector<64x1xf32> to vector<64x256xf32>
    %11 = arith.mulf %9, %10 : vector<64x256xf32>
    %12 = vector.extract_strided_slice %5 {offsets = [1, 0], sizes = [1, 256], strides = [1, 1]} : vector<3x256xf32> to vector<1x256xf32>
    %c1 = arith.constant 1 : index
    %c0_9 = arith.constant 0 : index
    %c0_10 = arith.constant 0 : index
    %13 = vector.load %arg4[%c1, %c0_9, %c0_10] : memref<3x64x1xf32, #tpu.memory_space<vmem>>, vector<1x64x1xf32>
    %14 = vector.shape_cast %13 : vector<1x64x1xf32> to vector<64x1xf32>
    %15 = vector.broadcast %12 : vector<1x256xf32> to vector<64x256xf32>
    %16 = vector.broadcast %14 : vector<64x1xf32> to vector<64x256xf32>
    %17 = arith.mulf %15, %16 : vector<64x256xf32>
    %18 = arith.addf %11, %17 : vector<64x256xf32>
    %19 = vector.extract_strided_slice %5 {offsets = [2, 0], sizes = [1, 256], strides = [1, 1]} : vector<3x256xf32> to vector<1x256xf32>
    %c2 = arith.constant 2 : index
    %c0_11 = arith.constant 0 : index
    %c0_12 = arith.constant 0 : index
    %20 = vector.load %arg4[%c2, %c0_11, %c0_12] : memref<3x64x1xf32, #tpu.memory_space<vmem>>, vector<1x64x1xf32>
    %21 = vector.shape_cast %20 : vector<1x64x1xf32> to vector<64x1xf32>
    %22 = vector.broadcast %19 : vector<1x256xf32> to vector<64x256xf32>
    %23 = vector.broadcast %21 : vector<64x1xf32> to vector<64x256xf32>
    %24 = arith.mulf %22, %23 : vector<64x256xf32>
    %25 = arith.addf %18, %24 : vector<64x256xf32>
    %cst = arith.constant 0.000000e+00 : f32
    %26 = vector.broadcast %cst : f32 to vector<64x256xf32>
    %27 = arith.maximumf %25, %26 : vector<64x256xf32>
    %c0_13 = arith.constant 0 : index
    %c0_14 = arith.constant 0 : index
    %c0_15 = arith.constant 0 : index
    %28 = vector.load %arg5[%c0_13, %c0_14, %c0_15] : memref<2x64x256xf32, #tpu.memory_space<vmem>>, vector<1x64x256xf32>
    %29 = vector.shape_cast %28 : vector<1x64x256xf32> to vector<64x256xf32>
    %30 = vector.shape_cast %27 : vector<64x256xf32> to vector<1x64x256xf32>
    tpu.vector_store %arg5[%c0_13, %c0_14, %c0_15], %30 {strides = array<i32>} : memref<2x64x256xf32, #tpu.memory_space<vmem>>, vector<1x64x256xf32>,
    %c1_16 = arith.constant 1 : index
    %c0_17 = arith.constant 0 : index
    %c0_18 = arith.constant 0 : index
    %31 = vector.load %arg1[%c1_16, %c0_17, %c0_18] : memref<2x3x256xf32, #tpu.memory_space<vmem>>, vector<1x3x256xf32>
    %32 = vector.shape_cast %31 : vector<1x3x256xf32> to vector<3x256xf32>
    %33 = arith.mulf %32, %0 : vector<3x256xf32>
    %34 = arith.addf %33, %1 : vector<3x256xf32>
    %35 = vector.extract_strided_slice %34 {offsets = [0, 0], sizes = [1, 256], strides = [1, 1]} : vector<3x256xf32> to vector<1x256xf32>
    %c0_19 = arith.constant 0 : index
    %c0_20 = arith.constant 0 : index
    %c0_21 = arith.constant 0 : index
    %36 = vector.load %arg4[%c0_19, %c0_20, %c0_21] : memref<3x64x1xf32, #tpu.memory_space<vmem>>, vector<1x64x1xf32>
    %37 = vector.shape_cast %36 : vector<1x64x1xf32> to vector<64x1xf32>
    %38 = vector.broadcast %35 : vector<1x256xf32> to vector<64x256xf32>
    %39 = vector.broadcast %37 : vector<64x1xf32> to vector<64x256xf32>
    %40 = arith.mulf %38, %39 : vector<64x256xf32>
    %41 = vector.extract_strided_slice %34 {offsets = [1, 0], sizes = [1, 256], strides = [1, 1]} : vector<3x256xf32> to vector<1x256xf32>
    %c1_22 = arith.constant 1 : index
    %c0_23 = arith.constant 0 : index
    %c0_24 = arith.constant 0 : index
    %42 = vector.load %arg4[%c1_22, %c0_23, %c0_24] : memref<3x64x1xf32, #tpu.memory_space<vmem>>, vector<1x64x1xf32>
    %43 = vector.shape_cast %42 : vector<1x64x1xf32> to vector<64x1xf32>
    %44 = vector.broadcast %41 : vector<1x256xf32> to vector<64x256xf32>
    %45 = vector.broadcast %43 : vector<64x1xf32> to vector<64x256xf32>
    %46 = arith.mulf %44, %45 : vector<64x256xf32>
    %47 = arith.addf %40, %46 : vector<64x256xf32>
    %48 = vector.extract_strided_slice %34 {offsets = [2, 0], sizes = [1, 256], strides = [1, 1]} : vector<3x256xf32> to vector<1x256xf32>
    %c2_25 = arith.constant 2 : index
    %c0_26 = arith.constant 0 : index
    %c0_27 = arith.constant 0 : index
    %49 = vector.load %arg4[%c2_25, %c0_26, %c0_27] : memref<3x64x1xf32, #tpu.memory_space<vmem>>, vector<1x64x1xf32>
    %50 = vector.shape_cast %49 : vector<1x64x1xf32> to vector<64x1xf32>
    %51 = vector.broadcast %48 : vector<1x256xf32> to vector<64x256xf32>
    %52 = vector.broadcast %50 : vector<64x1xf32> to vector<64x256xf32>
    %53 = arith.mulf %51, %52 : vector<64x256xf32>
    %54 = arith.addf %47, %53 : vector<64x256xf32>
    %cst_28 = arith.constant 0.000000e+00 : f32
    %55 = vector.broadcast %cst_28 : f32 to vector<64x256xf32>
    %56 = arith.maximumf %54, %55 : vector<64x256xf32>
    %c1_29 = arith.constant 1 : index
    %c0_30 = arith.constant 0 : index
    %c0_31 = arith.constant 0 : index
    %57 = vector.load %arg5[%c1_29, %c0_30, %c0_31] : memref<2x64x256xf32, #tpu.memory_space<vmem>>, vector<1x64x256xf32>
    %58 = vector.shape_cast %57 : vector<1x64x256xf32> to vector<64x256xf32>
    %59 = vector.shape_cast %56 : vector<64x256xf32> to vector<1x64x256xf32>
    tpu.vector_store %arg5[%c1_29, %c0_30, %c0_31], %59 {strides = array<i32>} : memref<2x64x256xf32, #tpu.memory_space<vmem>>, vector<1x64x256xf32>,
    return
  }
  func.func @transform_0(%arg0: i32) -> (i32, i32, i32) {
    %c0_i32 = arith.constant 0 : i32
    %c0_i32_0 = arith.constant 0 : i32
    %c0_i32_1 = arith.constant 0 : i32
    return %arg0, %c0_i32, %c0_i32_0 : i32, i32, i32
  }
  func.func @transform_1(%arg0: i32) -> (i32, i32) {
    %c0_i32 = arith.constant 0 : i32
    %c0_i32_0 = arith.constant 0 : i32
    %c0_i32_1 = arith.constant 0 : i32
    return %c0_i32, %c0_i32_0 : i32, i32
  }
  func.func @transform_2(%arg0: i32) -> (i32, i32) {
    %c0_i32 = arith.constant 0 : i32
    %c0_i32_0 = arith.constant 0 : i32
    %c0_i32_1 = arith.constant 0 : i32
    return %c0_i32, %c0_i32_0 : i32, i32
  }
  func.func @transform_3(%arg0: i32) -> (i32, i32, i32) {
    %c0_i32 = arith.constant 0 : i32
    %c0_i32_0 = arith.constant 0 : i32
    %c0_i32_1 = arith.constant 0 : i32
    %c0_i32_2 = arith.constant 0 : i32
    return %c0_i32, %c0_i32_0, %c0_i32_1 : i32, i32, i32
  }
  func.func @transform_4(%arg0: i32) -> (i32, i32, i32) {
    %c0_i32 = arith.constant 0 : i32
    %c0_i32_0 = arith.constant 0 : i32
    %c0_i32_1 = arith.constant 0 : i32
    return %arg0, %c0_i32, %c0_i32_0 : i32, i32, i32
  }
}

</mosaic_0001>

<llo_original>
// kernel: embed_forward.1
$region0: #{embed_forward.1}
  #allocation0 [shape = 'u32[]', space=smem, size = 0x4, offset = 0x4, fixed_abs, tag = 'smem constant byte address 0x4 - core index']
  #allocation1 [shape = 'u32[144,128]{1,0:T(1,128)}', space=vmem, size = 0x12000, scoped, tag = 'internal scratch']
  %s0 = inlined_call_operand.vmem [shape: f32[2,3,256], index: 0, kind: input, shape index: {}]
  %s1 = inlined_call_operand.vmem [shape: f32[3,256], index: 1, kind: input, shape index: {}]
  %s2 = inlined_call_operand.vmem [shape: f32[3,256], index: 2, kind: input, shape index: {}]
  %s3 = inlined_call_operand.vmem [shape: f32[3,64,1], index: 3, kind: input, shape index: {}]
  %s4 = inlined_call_operand.vmem [shape: f32[2,64,256], index: 4, kind: output, shape index: {}]
  %s5 = sld [smem:[#allocation0]]
  $region26: #{embed_forward.1} parent=0
    _
  %s7 = ssub.s32 1, %s5
  %s8 = scalar_select 0, %s7, %s5
  // Predicated region
  $region2: #{embed_forward.1} parent=0 // pred_check
    _
  $region3: #{embed_forward.1} parent=0 // pred_check_branch
    %10 = sbr.rel (0) target = $region5
  $region4: #{embed_forward.1} parent=0 // pred_region
    _
  $region5: #{embed_forward.1} parent=0 // pred_fallthru
    _
  // Predicated region
  $region6: #{embed_forward.1} parent=0 // pred_check
    _
  $region7: #{embed_forward.1} parent=0 // pred_check_branch
    %12 = sbr.rel (0) target = $region9
  $region8: #{embed_forward.1} parent=0 // pred_region
    _
  $region9: #{embed_forward.1} parent=0 // pred_fallthru
    _
  // Predicated region
  $region10: #{embed_forward.1} parent=0 // pred_check
    _
  $region11: #{embed_forward.1} parent=0 // pred_check_branch
    %14 = sbr.rel (0) target = $region13
  $region12: #{embed_forward.1} parent=0 // pred_region
    _
  $region13: #{embed_forward.1} parent=0 // pred_fallthru
    _
  // Predicated region
  $region14: #{embed_forward.1} parent=0 // pred_check
    _
  $region15: #{embed_forward.1} parent=0 // pred_check_branch
    %16 = sbr.rel (0) target = $region17
  $region16: #{embed_forward.1} parent=0 // pred_region
    _
  $region17: #{embed_forward.1} parent=0 // pred_fallthru
    _
  %v17 = vld [vmem:[%s1] sm:$0x77]
  %v18 = vld [vmem:[%s2] sm:$0x77]
  %v19 = vld [vmem:[%s0] sm:$0x77]
  %v20 = vmul.f32 %v19, %v17
  %v21 = vadd.f32 %v20, %v18
  %v22 = vld [vmem:[%s3] sm:$0xff]
  %v23 = vld [vmem:[%s3 + $0x8] sm:$0xff]
  %v24 = vld [vmem:[%s3 + $0x10] sm:$0xff]
  %v25 = vld [vmem:[%s3 + $0x18] sm:$0xff]
  %v26 = vld [vmem:[%s3 + $0x20] sm:$0xff]
  %v27 = vld [vmem:[%s3 + $0x28] sm:$0xff]
  %v28 = vld [vmem:[%s3 + $0x30] sm:$0xff]
  %v29 = vld [vmem:[%s3 + $0x38] sm:$0xff]
  %v31 = vlaneseq
  %v32 = vshrl.u32 %v31, 7
  %v33 = vsub.s32 0, %v32
  %v34 = vrot.slane %v21, %v33
  %v35 = vlaneseq
  %v36 = vshrl.u32 %v35, 7
  %v37 = vsub.s32 4, %v36
  %v38 = vrot.slane %v21, %v37
  %v41 = vlaneseq
  %v42 = vshrl.u32 %v41, 7
  %v43 = vsub.s32 0, %v42
  %v44 = vrot.slane %v34, %v43
  %v45 = vlaneseq
  %v46 = vshrl.u32 %v45, 7
  %v47 = vsub.s32 0, %v46
  %v48 = vrot.slane %v38, %v47
  %50 = vset.pattern.permute.xlu0 0
  %51 = vperm.xlu0 %50, %v22
  %v52 = vpop.permute.xlu0 %51
  %55 = vset.pattern.permute.xlu0 0
  %56 = vperm.xlu0 %55, %v23
  %v57 = vpop.permute.xlu0 %56
  %60 = vset.pattern.permute.xlu0 0
  %61 = vperm.xlu0 %60, %v24
  %v62 = vpop.permute.xlu0 %61
  %65 = vset.pattern.permute.xlu0 0
  %66 = vperm.xlu0 %65, %v25
  %v67 = vpop.permute.xlu0 %66
  %70 = vset.pattern.permute.xlu0 0
  %71 = vperm.xlu0 %70, %v26
  %v72 = vpop.permute.xlu0 %71
  %75 = vset.pattern.permute.xlu0 0
  %76 = vperm.xlu0 %75, %v27
  %v77 = vpop.permute.xlu0 %76
  %80 = vset.pattern.permute.xlu0 0
  %81 = vperm.xlu0 %80, %v28
  %v82 = vpop.permute.xlu0 %81
  %85 = vset.pattern.permute.xlu0 0
  %86 = vperm.xlu0 %85, %v29
  %v87 = vpop.permute.xlu0 %86
  %v89 = vmul.f32 %v44, %v52
  %v90 = vmul.f32 %v48, %v52
  %v91 = vmul.f32 %v44, %v57
  %v92 = vmul.f32 %v48, %v57
  %v93 = vmul.f32 %v44, %v62
  %v94 = vmul.f32 %v48, %v62
  %v95 = vmul.f32 %v44, %v67
  %v96 = vmul.f32 %v48, %v67
  %v97 = vmul.f32 %v44, %v72
  %v98 = vmul.f32 %v48, %v72
  %v99 = vmul.f32 %v44, %v77
  %v100 = vmul.f32 %v48, %v77
  %v101 = vmul.f32 %v44, %v82
  %v102 = vmul.f32 %v48, %v82
  %v103 = vmul.f32 %v44, %v87
  %v104 = vmul.f32 %v48, %v87
  %s105 = scalar_lea.vmem %s3, 64
  %v106 = vld [vmem:[%s105] sm:$0xff]
  %v107 = vld [vmem:[%s105 + $0x8] sm:$0xff]
  %v108 = vld [vmem:[%s105 + $0x10] sm:$0xff]
  %v109 = vld [vmem:[%s105 + $0x18] sm:$0xff]
  %v110 = vld [vmem:[%s105 + $0x20] sm:$0xff]
  %v111 = vld [vmem:[%s105 + $0x28] sm:$0xff]
  %v112 = vld [vmem:[%s105 + $0x30] sm:$0xff]
  %v113 = vld [vmem:[%s105 + $0x38] sm:$0xff]
  %v114 = vlaneseq
  %v115 = vshrl.u32 %v114, 7
  %v116 = vsub.s32 1, %v115
  %v117 = vrot.slane %v21, %v116
  %v118 = vlaneseq
  %v119 = vshrl.u32 %v118, 7
  %v120 = vsub.s32 5, %v119
  %v121 = vrot.slane %v21, %v120
  %v124 = vlaneseq
  %v125 = vshrl.u32 %v124, 7
  %v126 = vsub.s32 1, %v125
  %v127 = vrot.slane %v117, %v126
  %v128 = vlaneseq
  %v129 = vshrl.u32 %v128, 7
  %v130 = vsub.s32 1, %v129
  %v131 = vrot.slane %v121, %v130
  %133 = vset.pattern.permute.xlu0 0
  %134 = vperm.xlu0 %133, %v106
  %v135 = vpop.permute.xlu0 %134
  %138 = vset.pattern.permute.xlu0 0
  %139 = vperm.xlu0 %138, %v107
  %v140 = vpop.permute.xlu0 %139
  %143 = vset.pattern.permute.xlu0 0
  %144 = vperm.xlu0 %143, %v108
  %v145 = vpop.permute.xlu0 %144
  %148 = vset.pattern.permute.xlu0 0
  %149 = vperm.xlu0 %148, %v109
  %v150 = vpop.permute.xlu0 %149
  %153 = vset.pattern.permute.xlu0 0
  %154 = vperm.xlu0 %153, %v110
  %v155 = vpop.permute.xlu0 %154
  %158 = vset.pattern.permute.xlu0 0
  %159 = vperm.xlu0 %158, %v111
  %v160 = vpop.permute.xlu0 %159
  %163 = vset.pattern.permute.xlu0 0
  %164 = vperm.xlu0 %163, %v112
  %v165 = vpop.permute.xlu0 %164
  %168 = vset.pattern.permute.xlu0 0
  %169 = vperm.xlu0 %168, %v113
  %v170 = vpop.permute.xlu0 %169
  %v172 = vmul.f32 %v127, %v135
  %v173 = vmul.f32 %v131, %v135
  %v174 = vmul.f32 %v127, %v140
  %v175 = vmul.f32 %v131, %v140
  %v176 = vmul.f32 %v127, %v145
  %v177 = vmul.f32 %v131, %v145
  %v178 = vmul.f32 %v127, %v150
  %v179 = vmul.f32 %v131, %v150
  %v180 = vmul.f32 %v127, %v155
  %v181 = vmul.f32 %v131, %v155
  %v182 = vmul.f32 %v127, %v160
  %v183 = vmul.f32 %v131, %v160
  %v184 = vmul.f32 %v127, %v165
  %v185 = vmul.f32 %v131, %v165
  %v186 = vmul.f32 %v127, %v170
  %v187 = vmul.f32 %v131, %v170
  %v188 = vadd.f32 %v89, %v172
  %v189 = vadd.f32 %v90, %v173
  %v190 = vadd.f32 %v91, %v174
  %v191 = vadd.f32 %v92, %v175
  %v192 = vadd.f32 %v93, %v176
  %v193 = vadd.f32 %v94, %v177
  %v194 = vadd.f32 %v95, %v178
  %v195 = vadd.f32 %v96, %v179
  %v196 = vadd.f32 %v97, %v180
  %v197 = vadd.f32 %v98, %v181
  %v198 = vadd.f32 %v99, %v182
  %v199 = vadd.f32 %v100, %v183
  %v200 = vadd.f32 %v101, %v184
  %v201 = vadd.f32 %v102, %v185
  %v202 = vadd.f32 %v103, %v186
  %v203 = vadd.f32 %v104, %v187
  %s204 = scalar_lea.vmem %s3, 128
  %v205 = vld [vmem:[%s204] sm:$0xff]
  %v206 = vld [vmem:[%s204 + $0x8] sm:$0xff]
  %v207 = vld [vmem:[%s204 + $0x10] sm:$0xff]
  %v208 = vld [vmem:[%s204 + $0x18] sm:$0xff]
  %v209 = vld [vmem:[%s204 + $0x20] sm:$0xff]
  %v210 = vld [vmem:[%s204 + $0x28] sm:$0xff]
  %v211 = vld [vmem:[%s204 + $0x30] sm:$0xff]
  %v212 = vld [vmem:[%s204 + $0x38] sm:$0xff]
  %v213 = vlaneseq
  %v214 = vshrl.u32 %v213, 7
  %v215 = vsub.s32 2, %v214
  %v216 = vrot.slane %v21, %v215
  %v217 = vlaneseq
  %v218 = vshrl.u32 %v217, 7
  %v219 = vsub.s32 6, %v218
  %v220 = vrot.slane %v21, %v219
  %v223 = vlaneseq
  %v224 = vshrl.u32 %v223, 7
  %v225 = vsub.s32 2, %v224
  %v226 = vrot.slane %v216, %v225
  %v227 = vlaneseq
  %v228 = vshrl.u32 %v227, 7
  %v229 = vsub.s32 2, %v228
  %v230 = vrot.slane %v220, %v229
  %232 = vset.pattern.permute.xlu0 0
  %233 = vperm.xlu0 %232, %v205
  %v234 = vpop.permute.xlu0 %233
  %237 = vset.pattern.permute.xlu0 0
  %238 = vperm.xlu0 %237, %v206
  %v239 = vpop.permute.xlu0 %238
  %242 = vset.pattern.permute.xlu0 0
  %243 = vperm.xlu0 %242, %v207
  %v244 = vpop.permute.xlu0 %243
  %247 = vset.pattern.permute.xlu0 0
  %248 = vperm.xlu0 %247, %v208
  %v249 = vpop.permute.xlu0 %248
  %252 = vset.pattern.permute.xlu0 0
  %253 = vperm.xlu0 %252, %v209
  %v254 = vpop.permute.xlu0 %253
  %257 = vset.pattern.permute.xlu0 0
  %258 = vperm.xlu0 %257, %v210
  %v259 = vpop.permute.xlu0 %258
  %262 = vset.pattern.permute.xlu0 0
  %263 = vperm.xlu0 %262, %v211
  %v264 = vpop.permute.xlu0 %263
  %267 = vset.pattern.permute.xlu0 0
  %268 = vperm.xlu0 %267, %v212
  %v269 = vpop.permute.xlu0 %268
  %v271 = vmul.f32 %v226, %v234
  %v272 = vmul.f32 %v230, %v234
  %v273 = vmul.f32 %v226, %v239
  %v274 = vmul.f32 %v230, %v239
  %v275 = vmul.f32 %v226, %v244
  %v276 = vmul.f32 %v230, %v244
  %v277 = vmul.f32 %v226, %v249
  %v278 = vmul.f32 %v230, %v249
  %v279 = vmul.f32 %v226, %v254
  %v280 = vmul.f32 %v230, %v254
  %v281 = vmul.f32 %v226, %v259
  %v282 = vmul.f32 %v230, %v259
  %v283 = vmul.f32 %v226, %v264
  %v284 = vmul.f32 %v230, %v264
  %v285 = vmul.f32 %v226, %v269
  %v286 = vmul.f32 %v230, %v269
  %v287 = vadd.f32 %v188, %v271
  %v288 = vadd.f32 %v189, %v272
  %v289 = vadd.f32 %v190, %v273
  %v290 = vadd.f32 %v191, %v274
  %v291 = vadd.f32 %v192, %v275
  %v292 = vadd.f32 %v193, %v276
  %v293 = vadd.f32 %v194, %v277
  %v294 = vadd.f32 %v195, %v278
  %v295 = vadd.f32 %v196, %v279
  %v296 = vadd.f32 %v197, %v280
  %v297 = vadd.f32 %v198, %v281
  %v298 = vadd.f32 %v199, %v282
  %v299 = vadd.f32 %v200, %v283
  %v300 = vadd.f32 %v201, %v284
  %v301 = vadd.f32 %v202, %v285
  %v302 = vadd.f32 %v203, %v286
  %v303 = vmax.f32 %v287, 0.0
  %v304 = vmax.f32 %v288, 0.0
  %v305 = vmax.f32 %v289, 0.0
  %v306 = vmax.f32 %v290, 0.0
  %v307 = vmax.f32 %v291, 0.0
  %v308 = vmax.f32 %v292, 0.0
  %v309 = vmax.f32 %v293, 0.0
  %v310 = vmax.f32 %v294, 0.0
  %v311 = vmax.f32 %v295, 0.0
  %v312 = vmax.f32 %v296, 0.0
  %v313 = vmax.f32 %v297, 0.0
  %v314 = vmax.f32 %v298, 0.0
  %v315 = vmax.f32 %v299, 0.0
  %v316 = vmax.f32 %v300, 0.0
  %v317 = vmax.f32 %v301, 0.0
  %v318 = vmax.f32 %v302, 0.0
  %319 = vst [vmem:[%s4] sm:$0xff] %v303
  %320 = vst [vmem:[%s4 + $0x8] sm:$0xff] %v304
  %321 = vst [vmem:[%s4 + $0x10] sm:$0xff] %v305
  %322 = vst [vmem:[%s4 + $0x18] sm:$0xff] %v306
  %323 = vst [vmem:[%s4 + $0x20] sm:$0xff] %v307
  %324 = vst [vmem:[%s4 + $0x28] sm:$0xff] %v308
  %325 = vst [vmem:[%s4 + $0x30] sm:$0xff] %v309
  %326 = vst [vmem:[%s4 + $0x38] sm:$0xff] %v310
  %327 = vst [vmem:[%s4 + $0x40] sm:$0xff] %v311
  %328 = vst [vmem:[%s4 + $0x48] sm:$0xff] %v312
  %329 = vst [vmem:[%s4 + $0x50] sm:$0xff] %v313
  %330 = vst [vmem:[%s4 + $0x58] sm:$0xff] %v314
  %331 = vst [vmem:[%s4 + $0x60] sm:$0xff] %v315
  %332 = vst [vmem:[%s4 + $0x68] sm:$0xff] %v316
  %333 = vst [vmem:[%s4 + $0x70] sm:$0xff] %v317
  %334 = vst [vmem:[%s4 + $0x78] sm:$0xff] %v318
  %s335 = scalar_lea.vmem %s0, 8
  %v336 = vld [vmem:[%s335] sm:$0x77]
  %v337 = vmul.f32 %v336, %v17
  %v338 = vadd.f32 %v337, %v18
  %v339 = vld [vmem:[%s3] sm:$0xff]
  %v340 = vld [vmem:[%s3 + $0x8] sm:$0xff]
  %v341 = vld [vmem:[%s3 + $0x10] sm:$0xff]
  %v342 = vld [vmem:[%s3 + $0x18] sm:$0xff]
  %v343 = vld [vmem:[%s3 + $0x20] sm:$0xff]
  %v344 = vld [vmem:[%s3 + $0x28] sm:$0xff]
  %v345 = vld [vmem:[%s3 + $0x30] sm:$0xff]
  %v346 = vld [vmem:[%s3 + $0x38] sm:$0xff]
  %v348 = vlaneseq
  %v349 = vshrl.u32 %v348, 7
  %v350 = vsub.s32 0, %v349
  %v351 = vrot.slane %v338, %v350
  %v352 = vlaneseq
  %v353 = vshrl.u32 %v352, 7
  %v354 = vsub.s32 4, %v353
  %v355 = vrot.slane %v338, %v354
  %v358 = vlaneseq
  %v359 = vshrl.u32 %v358, 7
  %v360 = vsub.s32 0, %v359
  %v361 = vrot.slane %v351, %v360
  %v362 = vlaneseq
  %v363 = vshrl.u32 %v362, 7
  %v364 = vsub.s32 0, %v363
  %v365 = vrot.slane %v355, %v364
  %367 = vset.pattern.permute.xlu0 0
  %368 = vperm.xlu0 %367, %v339
  %v369 = vpop.permute.xlu0 %368
  %372 = vset.pattern.permute.xlu0 0
  %373 = vperm.xlu0 %372, %v340
  %v374 = vpop.permute.xlu0 %373
  %377 = vset.pattern.permute.xlu0 0
  %378 = vperm.xlu0 %377, %v341
  %v379 = vpop.permute.xlu0 %378
  %382 = vset.pattern.permute.xlu0 0
  %383 = vperm.xlu0 %382, %v342
  %v384 = vpop.permute.xlu0 %383
  %387 = vset.pattern.permute.xlu0 0
  %388 = vperm.xlu0 %387, %v343
  %v389 = vpop.permute.xlu0 %388
  %392 = vset.pattern.permute.xlu0 0
  %393 = vperm.xlu0 %392, %v344
  %v394 = vpop.permute.xlu0 %393
  %397 = vset.pattern.permute.xlu0 0
  %398 = vperm.xlu0 %397, %v345
  %v399 = vpop.permute.xlu0 %398
  %402 = vset.pattern.permute.xlu0 0
  %403 = vperm.xlu0 %402, %v346
  %v404 = vpop.permute.xlu0 %403
  %v406 = vmul.f32 %v361, %v369
  %v407 = vmul.f32 %v365, %v369
  %v408 = vmul.f32 %v361, %v374
  %v409 = vmul.f32 %v365, %v374
  %v410 = vmul.f32 %v361, %v379
  %v411 = vmul.f32 %v365, %v379
  %v412 = vmul.f32 %v361, %v384
  %v413 = vmul.f32 %v365, %v384
  %v414 = vmul.f32 %v361, %v389
  %v415 = vmul.f32 %v365, %v389
  %v416 = vmul.f32 %v361, %v394
  %v417 = vmul.f32 %v365, %v394
  %v418 = vmul.f32 %v361, %v399
  %v419 = vmul.f32 %v365, %v399
  %v420 = vmul.f32 %v361, %v404
  %v421 = vmul.f32 %v365, %v404
  %v422 = vld [vmem:[%s105] sm:$0xff]
  %v423 = vld [vmem:[%s105 + $0x8] sm:$0xff]
  %v424 = vld [vmem:[%s105 + $0x10] sm:$0xff]
  %v425 = vld [vmem:[%s105 + $0x18] sm:$0xff]
  %v426 = vld [vmem:[%s105 + $0x20] sm:$0xff]
  %v427 = vld [vmem:[%s105 + $0x28] sm:$0xff]
  %v428 = vld [vmem:[%s105 + $0x30] sm:$0xff]
  %v429 = vld [vmem:[%s105 + $0x38] sm:$0xff]
  %v430 = vlaneseq
  %v431 = vshrl.u32 %v430, 7
  %v432 = vsub.s32 1, %v431
  %v433 = vrot.slane %v338, %v432
  %v434 = vlaneseq
  %v435 = vshrl.u32 %v434, 7
  %v436 = vsub.s32 5, %v435
  %v437 = vrot.slane %v338, %v436
  %v440 = vlaneseq
  %v441 = vshrl.u32 %v440, 7
  %v442 = vsub.s32 1, %v441
  %v443 = vrot.slane %v433, %v442
  %v444 = vlaneseq
  %v445 = vshrl.u32 %v444, 7
  %v446 = vsub.s32 1, %v445
  %v447 = vrot.slane %v437, %v446
  %449 = vset.pattern.permute.xlu0 0
  %450 = vperm.xlu0 %449, %v422
  %v451 = vpop.permute.xlu0 %450
  %454 = vset.pattern.permute.xlu0 0
  %455 = vperm.xlu0 %454, %v423
  %v456 = vpop.permute.xlu0 %455
  %459 = vset.pattern.permute.xlu0 0
  %460 = vperm.xlu0 %459, %v424
  %v461 = vpop.permute.xlu0 %460
  %464 = vset.pattern.permute.xlu0 0
  %465 = vperm.xlu0 %464, %v425
  %v466 = vpop.permute.xlu0 %465
  %469 = vset.pattern.permute.xlu0 0
  %470 = vperm.xlu0 %469, %v426
  %v471 = vpop.permute.xlu0 %470
  %474 = vset.pattern.permute.xlu0 0
  %475 = vperm.xlu0 %474, %v427
  %v476 = vpop.permute.xlu0 %475
  %479 = vset.pattern.permute.xlu0 0
  %480 = vperm.xlu0 %479, %v428
  %v481 = vpop.permute.xlu0 %480
  %484 = vset.pattern.permute.xlu0 0
  %485 = vperm.xlu0 %484, %v429
  %v486 = vpop.permute.xlu0 %485
  %v488 = vmul.f32 %v443, %v451
  %v489 = vmul.f32 %v447, %v451
  %v490 = vmul.f32 %v443, %v456
  %v491 = vmul.f32 %v447, %v456
  %v492 = vmul.f32 %v443, %v461
  %v493 = vmul.f32 %v447, %v461
  %v494 = vmul.f32 %v443, %v466
  %v495 = vmul.f32 %v447, %v466
  %v496 = vmul.f32 %v443, %v471
  %v497 = vmul.f32 %v447, %v471
  %v498 = vmul.f32 %v443, %v476
  %v499 = vmul.f32 %v447, %v476
  %v500 = vmul.f32 %v443, %v481
  %v501 = vmul.f32 %v447, %v481
  %v502 = vmul.f32 %v443, %v486
  %v503 = vmul.f32 %v447, %v486
  %v504 = vadd.f32 %v406, %v488
  %v505 = vadd.f32 %v407, %v489
  %v506 = vadd.f32 %v408, %v490
  %v507 = vadd.f32 %v409, %v491
  %v508 = vadd.f32 %v410, %v492
  %v509 = vadd.f32 %v411, %v493
  %v510 = vadd.f32 %v412, %v494
  %v511 = vadd.f32 %v413, %v495
  %v512 = vadd.f32 %v414, %v496
  %v513 = vadd.f32 %v415, %v497
  %v514 = vadd.f32 %v416, %v498
  %v515 = vadd.f32 %v417, %v499
  %v516 = vadd.f32 %v418, %v500
  %v517 = vadd.f32 %v419, %v501
  %v518 = vadd.f32 %v420, %v502
  %v519 = vadd.f32 %v421, %v503
  %v520 = vld [vmem:[%s204] sm:$0xff]
  %v521 = vld [vmem:[%s204 + $0x8] sm:$0xff]
  %v522 = vld [vmem:[%s204 + $0x10] sm:$0xff]
  %v523 = vld [vmem:[%s204 + $0x18] sm:$0xff]
  %v524 = vld [vmem:[%s204 + $0x20] sm:$0xff]
  %v525 = vld [vmem:[%s204 + $0x28] sm:$0xff]
  %v526 = vld [vmem:[%s204 + $0x30] sm:$0xff]
  %v527 = vld [vmem:[%s204 + $0x38] sm:$0xff]
  %v528 = vlaneseq
  %v529 = vshrl.u32 %v528, 7
  %v530 = vsub.s32 2, %v529
  %v531 = vrot.slane %v338, %v530
  %v532 = vlaneseq
  %v533 = vshrl.u32 %v532, 7
  %v534 = vsub.s32 6, %v533
  %v535 = vrot.slane %v338, %v534
  %v538 = vlaneseq
  %v539 = vshrl.u32 %v538, 7
  %v540 = vsub.s32 2, %v539
  %v541 = vrot.slane %v531, %v540
  %v542 = vlaneseq
  %v543 = vshrl.u32 %v542, 7
  %v544 = vsub.s32 2, %v543
  %v545 = vrot.slane %v535, %v544
  %547 = vset.pattern.permute.xlu0 0
  %548 = vperm.xlu0 %547, %v520
  %v549 = vpop.permute.xlu0 %548
  %552 = vset.pattern.permute.xlu0 0
  %553 = vperm.xlu0 %552, %v521
  %v554 = vpop.permute.xlu0 %553
  %557 = vset.pattern.permute.xlu0 0
  %558 = vperm.xlu0 %557, %v522
  %v559 = vpop.permute.xlu0 %558
  %562 = vset.pattern.permute.xlu0 0
  %563 = vperm.xlu0 %562, %v523
  %v564 = vpop.permute.xlu0 %563
  %567 = vset.pattern.permute.xlu0 0
  %568 = vperm.xlu0 %567, %v524
  %v569 = vpop.permute.xlu0 %568
  %572 = vset.pattern.permute.xlu0 0
  %573 = vperm.xlu0 %572, %v525
  %v574 = vpop.permute.xlu0 %573
  %577 = vset.pattern.permute.xlu0 0
  %578 = vperm.xlu0 %577, %v526
  %v579 = vpop.permute.xlu0 %578
  %582 = vset.pattern.permute.xlu0 0
  %583 = vperm.xlu0 %582, %v527
  %v584 = vpop.permute.xlu0 %583
  %v586 = vmul.f32 %v541, %v549
  %v587 = vmul.f32 %v545, %v549
  %v588 = vmul.f32 %v541, %v554
  %v589 = vmul.f32 %v545, %v554
  %v590 = vmul.f32 %v541, %v559
  %v591 = vmul.f32 %v545, %v559
  %v592 = vmul.f32 %v541, %v564
  %v593 = vmul.f32 %v545, %v564
  %v594 = vmul.f32 %v541, %v569
  %v595 = vmul.f32 %v545, %v569
  %v596 = vmul.f32 %v541, %v574
  %v597 = vmul.f32 %v545, %v574
  %v598 = vmul.f32 %v541, %v579
  %v599 = vmul.f32 %v545, %v579
  %v600 = vmul.f32 %v541, %v584
  %v601 = vmul.f32 %v545, %v584
  %v602 = vadd.f32 %v504, %v586
  %v603 = vadd.f32 %v505, %v587
  %v604 = vadd.f32 %v506, %v588
  %v605 = vadd.f32 %v507, %v589
  %v606 = vadd.f32 %v508, %v590
  %v607 = vadd.f32 %v509, %v591
  %v608 = vadd.f32 %v510, %v592
  %v609 = vadd.f32 %v511, %v593
  %v610 = vadd.f32 %v512, %v594
  %v611 = vadd.f32 %v513, %v595
  %v612 = vadd.f32 %v514, %v596
  %v613 = vadd.f32 %v515, %v597
  %v614 = vadd.f32 %v516, %v598
  %v615 = vadd.f32 %v517, %v599
  %v616 = vadd.f32 %v518, %v600
  %v617 = vadd.f32 %v519, %v601
  %v618 = vmax.f32 %v602, 0.0
  %v619 = vmax.f32 %v603, 0.0
  %v620 = vmax.f32 %v604, 0.0
  %v621 = vmax.f32 %v605, 0.0
  %v622 = vmax.f32 %v606, 0.0
  %v623 = vmax.f32 %v607, 0.0
  %v624 = vmax.f32 %v608, 0.0
  %v625 = vmax.f32 %v609, 0.0
  %v626 = vmax.f32 %v610, 0.0
  %v627 = vmax.f32 %v611, 0.0
  %v628 = vmax.f32 %v612, 0.0
  %v629 = vmax.f32 %v613, 0.0
  %v630 = vmax.f32 %v614, 0.0
  %v631 = vmax.f32 %v615, 0.0
  %v632 = vmax.f32 %v616, 0.0
  %v633 = vmax.f32 %v617, 0.0
  %s634 = scalar_lea.vmem %s4, 128
  %635 = vst [vmem:[%s634] sm:$0xff] %v618
  %636 = vst [vmem:[%s634 + $0x8] sm:$0xff] %v619
  %637 = vst [vmem:[%s634 + $0x10] sm:$0xff] %v620
  %638 = vst [vmem:[%s634 + $0x18] sm:$0xff] %v621
  %639 = vst [vmem:[%s634 + $0x20] sm:$0xff] %v622
  %640 = vst [vmem:[%s634 + $0x28] sm:$0xff] %v623
  %641 = vst [vmem:[%s634 + $0x30] sm:$0xff] %v624
  %642 = vst [vmem:[%s634 + $0x38] sm:$0xff] %v625
  %643 = vst [vmem:[%s634 + $0x40] sm:$0xff] %v626
  %644 = vst [vmem:[%s634 + $0x48] sm:$0xff] %v627
  %645 = vst [vmem:[%s634 + $0x50] sm:$0xff] %v628
  %646 = vst [vmem:[%s634 + $0x58] sm:$0xff] %v629
  %647 = vst [vmem:[%s634 + $0x60] sm:$0xff] %v630
  %648 = vst [vmem:[%s634 + $0x68] sm:$0xff] %v631
  %649 = vst [vmem:[%s634 + $0x70] sm:$0xff] %v632
  %650 = vst [vmem:[%s634 + $0x78] sm:$0xff] %v633
  // Predicated region
  $region18: #{embed_forward.1} parent=0 // pred_check
    _
  $region19: #{embed_forward.1} parent=0 // pred_check_branch
    %652 = sbr.rel (0) target = $region21
  $region20: #{embed_forward.1} parent=0 // pred_region
    _
  $region21: #{embed_forward.1} parent=0 // pred_fallthru
    _
  // Predicated region
  $region22: #{embed_forward.1} parent=0 // pred_check
    _
  $region23: #{embed_forward.1} parent=0 // pred_check_branch
    %654 = sbr.rel (0) target = $region25
  $region24: #{embed_forward.1} parent=0 // pred_region
    _
  $region25: #{embed_forward.1} parent=0 // pred_fallthru
    _

</llo_original>
